<compile_context>
chip_gen: v5e
topology: v5e:2x2
jax: 0.10.0
libtpu: 0.0.40
codegen_flags: <defaults>
</compile_context>

<pallas_src>
import functools

import jax
import jax.numpy as jnp
from jax.experimental import pallas as pl
from jax.experimental.pallas import tpu as pltpu

_PAD_VALUE = -1e30  # exp(_PAD_VALUE - m) underflows to exactly 0.0 in f32.


def _gidp_kernel(x_ref, w_ref, b_ref, out_ref, m_ref, l_ref, acc_ref, *, top_k):
    """One (batch, spatial-tile) grid step.

    x_ref : (1, c_in, tile_n)   input tile (native dtype)
    w_ref : (c_feat, c_in)      1x1-conv weight (resident)
    b_ref : (c_feat, 1)         1x1-conv bias   (resident)
    out   : (1, c_feat, top_k)  written only on the last spatial tile
    m/l   : (top_k, 1) f32      online-softmax running max / running sum
    acc   : (top_k, c_in) f32   running pooled sum_n exp(atten - m) * x
    """
    t = pl.program_id(1)

    @pl.when(t == 0)
    def _init():
        m_ref[...] = jnp.full_like(m_ref, -jnp.inf)
        l_ref[...] = jnp.zeros_like(l_ref)
        acc_ref[...] = jnp.zeros_like(acc_ref)

    x = x_ref[0]                                   # (c_in, tile_n), native dtype
    c_in, tile_n = x.shape

    # ---- per-position top-k over the channel (sublane) axis, unrolled ------
    row_idx = jax.lax.broadcasted_iota(jnp.int32, (c_in, tile_n), 0)
    neg_inf = jnp.array(-jnp.inf, dtype=x.dtype)
    cur = x
    rows = []
    for _ in range(top_k):
        r = jnp.max(cur, axis=0, keepdims=True)    # (1, tile_n)
        rows.append(r)
        # Mask only the first occurrence of the max (torch.topk tie handling:
        # duplicate values stay eligible for later ranks).
        sel = jnp.min(jnp.where(cur == r, row_idx, c_in), axis=0, keepdims=True)
        cur = jnp.where(row_idx == sel, neg_inf, cur)
    atten = jnp.concatenate(rows, axis=0).astype(jnp.float32)   # (k, tile_n)

    # ---- online softmax over the spatial axis + pooled accumulation --------
    m_prev = m_ref[...]                                          # (k, 1)
    m_new = jnp.maximum(m_prev, jnp.max(atten, axis=-1, keepdims=True))
    alpha = jnp.exp(m_prev - m_new)                              # (k, 1)
    p = jnp.exp(atten - m_new)                                   # (k, tile_n)
    l_ref[...] = alpha * l_ref[...] + jnp.sum(p, axis=-1, keepdims=True)
    m_ref[...] = m_new

    # pooled[j, c] = sum_n p[j, n] * x[c, n]   (contract the lane axis, MXU)
    pooled = jax.lax.dot_general(
        p.astype(x.dtype), x,
        dimension_numbers=(((1,), (1,)), ((), ())),
        preferred_element_type=jnp.float32)                      # (k, c_in)
    acc_ref[...] = acc_ref[...] * alpha + pooled

    # ---- finalize: normalize, apply the 1x1 conv, add bias ------------------
    @pl.when(t == pl.num_programs(1) - 1)
    def _finalize():
        inv_l = pl.reciprocal(l_ref[...], approx=True)           # (k, 1)
        s = acc_ref[...] * inv_l                                 # (k, c_in)
        w = w_ref[...].astype(jnp.float32)                       # (c_feat, c_in)
        desc = jax.lax.dot_general(
            w, s, dimension_numbers=(((1,), (1,)), ((), ())),
            preferred_element_type=jnp.float32)                  # (c_feat, k)
        # Bias folded out of the N-domain: softmax rows sum to 1, so the bias
        # contributes exactly bias[f] per output column.
        out_ref[0] = (desc + b_ref[...].astype(jnp.float32)).astype(out_ref.dtype)


def _choose_tile_n(n, c_in, itemsize):
    """Pick the largest lane-aligned spatial tile that keeps the
    double-buffered input tile + top-k scan temporaries inside a safe VMEM
    budget (works on v7x's smaller 64 MiB VMEM too)."""
    if n <= 128:
        return n
    budget = 24 << 20                       # bytes for the N-sized working set
    per_col = c_in * (2 * itemsize + 6 * 4)  # 2x dbl-buf input + ~6 f32 temps
    t = budget // max(per_col, 1)
    t = max(128, (t // 128) * 128)
    t = min(t, 8192)
    t = min(t, ((n + 127) // 128) * 128)
    return int(t)


def gidp_forward(x_nchw, weight, bias, top_k, *, tile_n=None):
    """x_nchw: (B, C_in, H, W); weight: (c_feat, c_in); bias: (c_feat,)."""
    b, c_in, h, w = x_nchw.shape
    n = h * w
    c_feat = weight.shape[0]
    assert top_k <= c_in, "top_k must not exceed the number of input channels"

    x_flat = x_nchw.reshape(b, c_in, n)
    itemsize = jnp.dtype(x_flat.dtype).itemsize

    if tile_n is None:
        tile_n = _choose_tile_n(n, c_in, itemsize)

    # Lane-aligned spatial tile; pad N up to a multiple of it.
    if tile_n >= n:
        tile_n = n
        n_pad = n
    else:
        tile_n = max(128, (tile_n // 128) * 128)
        n_pad = ((n + tile_n - 1) // tile_n) * tile_n
    if n_pad != n:
        # Padded columns use a huge negative value: their exp underflows to
        # exactly 0, so they contribute nothing to the softmax pooling.
        x_flat = jnp.pad(x_flat, ((0, 0), (0, 0), (0, n_pad - n)),
                         constant_values=_PAD_VALUE)
    num_tiles = n_pad // tile_n

    bias2d = bias.reshape(c_feat, 1)

    # VMEM budget: double-buffered x tile + headroom for in-kernel temporaries
    # of the top-k scan (a handful of (c_in, tile_n) f32/int32 arrays).
    x_block_bytes = c_in * tile_n * itemsize
    vmem_bytes = 2 * x_block_bytes + 8 * c_in * tile_n * 4 + (4 << 20)
    vmem_limit = int(min(max(vmem_bytes, 16 << 20), 56 << 20))

    kernel = functools.partial(_gidp_kernel, top_k=top_k)
    return pl.pallas_call(
        kernel,
        out_shape=jax.ShapeDtypeStruct((b, c_feat, top_k), jnp.float32),
        grid=(b, num_tiles),
        in_specs=[
            pl.BlockSpec((1, c_in, tile_n), lambda i, t: (i, 0, t)),
            pl.BlockSpec((c_feat, c_in), lambda i, t: (0, 0)),   # resident
            pl.BlockSpec((c_feat, 1), lambda i, t: (0, 0)),      # resident
        ],
        out_specs=pl.BlockSpec((1, c_feat, top_k), lambda i, t: (i, 0, 0)),
        scratch_shapes=[
            pltpu.VMEM((top_k, 1), jnp.float32),      # running max m
            pltpu.VMEM((top_k, 1), jnp.float32),      # running sum l
            pltpu.VMEM((top_k, c_in), jnp.float32),   # pooled accumulator
        ],
        compiler_params=pltpu.CompilerParams(
            dimension_semantics=("parallel", "arbitrary"),
            vmem_limit_bytes=vmem_limit),
    )(x_flat, weight, bias2d)


def gidp_reference(x_nchw, weight, bias, top_k):
    """Pure-JAX reference matching the PyTorch forward."""
    b, c, h, w = x_nchw.shape
    n = h * w
    x_flat = x_nchw.reshape(b, c, n)
    feat = jnp.einsum("fc,bcn->bfn", weight, x_flat) + bias[None, :, None]
    atten = jax.lax.top_k(jnp.transpose(x_flat, (0, 2, 1)), top_k)[0]  # (b,n,k)
    atten = jnp.transpose(atten, (0, 2, 1))                            # (b,k,n)
    atten = jax.nn.softmax(atten, axis=-1)
    return jnp.einsum("bfn,bkn->bfk", feat, atten)


if __name__ == "__main__":
    B, C_IN, C_FEAT, TOP_K = 2, 4, 8, 2

    key = jax.random.PRNGKey(0)
    kx, kw, kb, kx2, kx3, kw3, kb3 = jax.random.split(key, 7)
    weight = jax.random.normal(kw, (C_FEAT, C_IN), dtype=jnp.float32) * 0.1
    bias = jax.random.normal(kb, (C_FEAT,), dtype=jnp.float32) * 0.01

    # Case 1: N divisible by the tile (2 spatial tiles -> exercises the
    # online-softmax accumulation across tiles).
    x1 = jax.random.normal(kx, (B, C_IN, 16, 16), dtype=jnp.float32)
    out1 = jax.block_until_ready(gidp_forward(x1, weight, bias, TOP_K, tile_n=128))
    ref1 = gidp_reference(x1, weight, bias, TOP_K)
    assert out1.shape == (B, C_FEAT, TOP_K)
    # Tolerance covers approx-reciprocal normalization + online-softmax reorder.
    assert jnp.allclose(out1, ref1, atol=1e-3, rtol=1e-3), "mismatch vs reference (case 1)"

    # Case 2: N not divisible by the tile (exercises the padded last tile).
    x2 = jax.random.normal(kx2, (B, C_IN, 13, 13), dtype=jnp.float32)
    out2 = jax.block_until_ready(gidp_forward(x2, weight, bias, TOP_K, tile_n=128))
    ref2 = gidp_reference(x2, weight, bias, TOP_K)
    assert jnp.allclose(out2, ref2, atol=1e-3, rtol=1e-3), "mismatch vs reference (case 2)"

    # Case 3: auto tile selection, wider channels / larger top_k.
    x3 = jax.random.normal(kx3, (B, 8, 16, 16), dtype=jnp.float32)
    weight3 = jax.random.normal(kw3, (C_FEAT, 8), dtype=jnp.float32) * 0.1
    bias3 = jax.random.normal(kb3, (C_FEAT,), dtype=jnp.float32) * 0.01
    out3 = jax.block_until_ready(gidp_forward(x3, weight3, bias3, 3))
    ref3 = gidp_reference(x3, weight3, bias3, 3)
    assert jnp.allclose(out3, ref3, atol=1e-3, rtol=1e-3), "mismatch vs reference (case 3)"

    print("KERNEL_OK")
</pallas_src>

<mosaic_0001>
module attributes {stable_mosaic.version = 11 : i64} {
  func.func @_gidp_kernel(%arg0: i32, %arg1: i32, %arg2: memref<1x4x128xf32, #tpu.memory_space<vmem>>, %arg3: memref<8x4xf32, #tpu.memory_space<vmem>>, %arg4: memref<8x1xf32, #tpu.memory_space<vmem>>, %arg5: memref<1x8x2xf32, #tpu.memory_space<vmem>>, %arg6: memref<2x1xf32, #tpu.memory_space<vmem>>, %arg7: memref<2x1xf32, #tpu.memory_space<vmem>>, %arg8: memref<2x4xf32, #tpu.memory_space<vmem>>) attributes {dimension_semantics = [#tpu.dimension_semantics<parallel>, #tpu.dimension_semantics<arbitrary>], iteration_bounds = array<i64: 2, 2>, scalar_prefetch = 0 : i64, scratch_operands = 3 : i64, tpu.core_type = #tpu.core_type<tc>, window_params = [{transform_indices = @transform_0, window_bounds = array<i64: 1, 4, 128>}, {pipeline_mode = #tpu.pipeline_mode<synchronous>, transform_indices = @transform_1, window_bounds = array<i64: 8, 4>}, {pipeline_mode = #tpu.pipeline_mode<synchronous>, transform_indices = @transform_2, window_bounds = array<i64: 8, 1>}, {transform_indices = @transform_3, window_bounds = array<i64: 1, 8, 2>}]} {
    %c0_i32 = arith.constant 0 : i32
    %0 = arith.cmpi eq, %arg1, %c0_i32 : i32
    %1 = arith.extui %0 : i1 to i32
    %c0_i32_0 = arith.constant 0 : i32
    %2 = arith.cmpi ne, %1, %c0_i32_0 : i32
    scf.if %2 {
      %cst_22 = arith.constant 0xFF800000 : f32
      %46 = vector.broadcast %cst_22 : f32 to vector<2x1xf32>
      %c0_23 = arith.constant 0 : index
      %c0_24 = arith.constant 0 : index
      %47 = vector.load %arg6[%c0_23, %c0_24] : memref<2x1xf32, #tpu.memory_space<vmem>>, vector<2x1xf32>
      tpu.vector_store %arg6[%c0_23, %c0_24], %46 {strides = array<i32>} : memref<2x1xf32, #tpu.memory_space<vmem>>, vector<2x1xf32>,
      %cst_25 = arith.constant 0.000000e+00 : f32
      %48 = vector.broadcast %cst_25 : f32 to vector<2x1xf32>
      %c0_26 = arith.constant 0 : index
      %c0_27 = arith.constant 0 : index
      %49 = vector.load %arg7[%c0_26, %c0_27] : memref<2x1xf32, #tpu.memory_space<vmem>>, vector<2x1xf32>
      tpu.vector_store %arg7[%c0_26, %c0_27], %48 {strides = array<i32>} : memref<2x1xf32, #tpu.memory_space<vmem>>, vector<2x1xf32>,
      %cst_28 = arith.constant 0.000000e+00 : f32
      %50 = vector.broadcast %cst_28 : f32 to vector<2x4xf32>
      %c0_29 = arith.constant 0 : index
      %c0_30 = arith.constant 0 : index
      %51 = vector.load %arg8[%c0_29, %c0_30] : memref<2x4xf32, #tpu.memory_space<vmem>>, vector<2x4xf32>
      tpu.vector_store %arg8[%c0_29, %c0_30], %50 {strides = array<i32>} : memref<2x4xf32, #tpu.memory_space<vmem>>, vector<2x4xf32>,
    } else {
    }
    %c0 = arith.constant 0 : index
    %c0_1 = arith.constant 0 : index
    %c0_2 = arith.constant 0 : index
    %3 = vector.load %arg2[%c0, %c0_1, %c0_2] : memref<1x4x128xf32, #tpu.memory_space<vmem>>, vector<1x4x128xf32>
    %4 = vector.shape_cast %3 : vector<1x4x128xf32> to vector<4x128xf32>
    %5 = tpu.iota {dimensions = array<i32: 0>} : vector<4x128xi32>
    %cst = arith.constant dense<0xFF800000> : vector<128xf32>
    %6 = vector.multi_reduction <maximumf>, %4, %cst [0] : vector<4x128xf32> to vector<128xf32>
    %7 = vector.shape_cast %6 : vector<128xf32> to vector<1x128xf32>
    %8 = vector.broadcast %7 : vector<1x128xf32> to vector<4x128xf32>
    %9 = arith.cmpf oeq, %4, %8 : vector<4x128xf32>
    %c4_i32 = arith.constant 4 : i32
    %10 = vector.broadcast %c4_i32 : i32 to vector<4x128xi32>
    %11 = arith.select %9, %5, %10 : vector<4x128xi1>, vector<4x128xi32>
    %cst_3 = arith.constant dense<2147483647> : vector<128xi32>
    %12 = vector.multi_reduction <minsi>, %11, %cst_3 [0] : vector<4x128xi32> to vector<128xi32>
    %13 = vector.shape_cast %12 : vector<128xi32> to vector<1x128xi32>
    %14 = vector.broadcast %13 : vector<1x128xi32> to vector<4x128xi32>
    %15 = arith.cmpi eq, %5, %14 : vector<4x128xi32>
    %cst_4 = arith.constant 0xFF800000 : f32
    %16 = vector.broadcast %cst_4 : f32 to vector<4x128xf32>
    %17 = arith.select %15, %16, %4 : vector<4x128xi1>, vector<4x128xf32>
    %cst_5 = arith.constant dense<0xFF800000> : vector<128xf32>
    %18 = vector.multi_reduction <maximumf>, %17, %cst_5 [0] : vector<4x128xf32> to vector<128xf32>
    %19 = vector.shape_cast %18 : vector<128xf32> to vector<1x128xf32>
    %20 = tpu.concatenate %7, %19 in 0 : vector<1x128xf32>, vector<1x128xf32> -> vector<2x128xf32>
    %c0_6 = arith.constant 0 : index
    %c0_7 = arith.constant 0 : index
    %21 = vector.load %arg6[%c0_6, %c0_7] : memref<2x1xf32, #tpu.memory_space<vmem>>, vector<2x1xf32>
    %cst_8 = arith.constant dense<0xFF800000> : vector<2xf32>
    %22 = vector.multi_reduction <maximumf>, %20, %cst_8 [1] : vector<2x128xf32> to vector<2xf32>
    %23 = vector.shape_cast %22 : vector<2xf32> to vector<2x1xf32>
    %24 = arith.maximumf %21, %23 : vector<2x1xf32>
    %25 = arith.subf %21, %24 : vector<2x1xf32>
    %26 = math.exp %25 : vector<2x1xf32>
    %27 = vector.broadcast %24 : vector<2x1xf32> to vector<2x128xf32>
    %28 = arith.subf %20, %27 : vector<2x128xf32>
    %29 = math.exp %28 : vector<2x128xf32>
    %c0_9 = arith.constant 0 : index
    %c0_10 = arith.constant 0 : index
    %30 = vector.load %arg7[%c0_9, %c0_10] : memref<2x1xf32, #tpu.memory_space<vmem>>, vector<2x1xf32>
    %31 = arith.mulf %26, %30 : vector<2x1xf32>
    %cst_11 = arith.constant dense<0.000000e+00> : vector<2xf32>
    %32 = vector.multi_reduction <add>, %29, %cst_11 [1] : vector<2x128xf32> to vector<2xf32>
    %33 = vector.shape_cast %32 : vector<2xf32> to vector<2x1xf32>
    %34 = arith.addf %31, %33 : vector<2x1xf32>
    %c0_12 = arith.constant 0 : index
    %c0_13 = arith.constant 0 : index
    %35 = vector.load %arg7[%c0_12, %c0_13] : memref<2x1xf32, #tpu.memory_space<vmem>>, vector<2x1xf32>
    tpu.vector_store %arg7[%c0_12, %c0_13], %34 {strides = array<i32>} : memref<2x1xf32, #tpu.memory_space<vmem>>, vector<2x1xf32>,
    %c0_14 = arith.constant 0 : index
    %c0_15 = arith.constant 0 : index
    %36 = vector.load %arg6[%c0_14, %c0_15] : memref<2x1xf32, #tpu.memory_space<vmem>>, vector<2x1xf32>
    tpu.vector_store %arg6[%c0_14, %c0_15], %24 {strides = array<i32>} : memref<2x1xf32, #tpu.memory_space<vmem>>, vector<2x1xf32>,
    %cst_16 = arith.constant dense<0.000000e+00> : vector<2x4xf32>
    %37 = tpu.matmul %29, %4, %cst_16 {dimension_numbers = #tpu.dot_dimension_numbers<[1], [1], [0], [0], [0, 0, 1, 0], [], []>} : vector<2x128xf32>, vector<4x128xf32>, vector<2x4xf32> -> vector<2x4xf32>
    %c0_17 = arith.constant 0 : index
    %c0_18 = arith.constant 0 : index
    %38 = vector.load %arg8[%c0_17, %c0_18] : memref<2x4xf32, #tpu.memory_space<vmem>>, vector<2x4xf32>
    %39 = vector.broadcast %26 : vector<2x1xf32> to vector<2x4xf32>
    %40 = arith.mulf %38, %39 : vector<2x4xf32>
    %41 = arith.addf %40, %37 : vector<2x4xf32>
    %c0_19 = arith.constant 0 : index
    %c0_20 = arith.constant 0 : index
    %42 = vector.load %arg8[%c0_19, %c0_20] : memref<2x4xf32, #tpu.memory_space<vmem>>, vector<2x4xf32>
    tpu.vector_store %arg8[%c0_19, %c0_20], %41 {strides = array<i32>} : memref<2x4xf32, #tpu.memory_space<vmem>>, vector<2x4xf32>,
    %c1_i32 = arith.constant 1 : i32
    %43 = arith.cmpi eq, %arg1, %c1_i32 : i32
    %44 = arith.extui %43 : i1 to i32
    %c0_i32_21 = arith.constant 0 : i32
    %45 = arith.cmpi ne, %44, %c0_i32_21 : i32
    scf.if %45 {
      %c0_22 = arith.constant 0 : index
      %c0_23 = arith.constant 0 : index
      %46 = vector.load %arg7[%c0_22, %c0_23] : memref<2x1xf32, #tpu.memory_space<vmem>>, vector<2x1xf32>
      %47 = tpu.reciprocal %46 {approx = true} : vector<2x1xf32> -> vector<2x1xf32>
      %c0_24 = arith.constant 0 : index
      %c0_25 = arith.constant 0 : index
      %48 = vector.load %arg8[%c0_24, %c0_25] : memref<2x4xf32, #tpu.memory_space<vmem>>, vector<2x4xf32>
      %49 = vector.broadcast %47 : vector<2x1xf32> to vector<2x4xf32>
      %50 = arith.mulf %48, %49 : vector<2x4xf32>
      %c0_26 = arith.constant 0 : index
      %c0_27 = arith.constant 0 : index
      %51 = vector.load %arg3[%c0_26, %c0_27] : memref<8x4xf32, #tpu.memory_space<vmem>>, vector<8x4xf32>
      %cst_28 = arith.constant dense<0.000000e+00> : vector<8x2xf32>
      %52 = tpu.matmul %51, %50, %cst_28 {dimension_numbers = #tpu.dot_dimension_numbers<[1], [1], [0], [0], [0, 0, 1, 0], [], []>} : vector<8x4xf32>, vector<2x4xf32>, vector<8x2xf32> -> vector<8x2xf32>
      %c0_29 = arith.constant 0 : index
      %c0_30 = arith.constant 0 : index
      %53 = vector.load %arg4[%c0_29, %c0_30] : memref<8x1xf32, #tpu.memory_space<vmem>>, vector<8x1xf32>
      %54 = vector.broadcast %53 : vector<8x1xf32> to vector<8x2xf32>
      %55 = arith.addf %52, %54 : vector<8x2xf32>
      %c0_31 = arith.constant 0 : index
      %c0_32 = arith.constant 0 : index
      %c0_33 = arith.constant 0 : index
      %56 = vector.load %arg5[%c0_31, %c0_32, %c0_33] : memref<1x8x2xf32, #tpu.memory_space<vmem>>, vector<1x8x2xf32>
      %57 = vector.shape_cast %56 : vector<1x8x2xf32> to vector<8x2xf32>
      %58 = vector.shape_cast %55 : vector<8x2xf32> to vector<1x8x2xf32>
      tpu.vector_store %arg5[%c0_31, %c0_32, %c0_33], %58 {strides = array<i32>} : memref<1x8x2xf32, #tpu.memory_space<vmem>>, vector<1x8x2xf32>,
    } else {
    }
    return
  }
  func.func @transform_0(%arg0: i32, %arg1: i32) -> (i32, i32, i32) {
    %c0_i32 = arith.constant 0 : i32
    %c0_i32_0 = arith.constant 0 : i32
    return %arg0, %c0_i32, %arg1 : i32, i32, i32
  }
  func.func @transform_1(%arg0: i32, %arg1: i32) -> (i32, i32) {
    %c0_i32 = arith.constant 0 : i32
    %c0_i32_0 = arith.constant 0 : i32
    %c0_i32_1 = arith.constant 0 : i32
    return %c0_i32, %c0_i32_0 : i32, i32
  }
  func.func @transform_2(%arg0: i32, %arg1: i32) -> (i32, i32) {
    %c0_i32 = arith.constant 0 : i32
    %c0_i32_0 = arith.constant 0 : i32
    %c0_i32_1 = arith.constant 0 : i32
    return %c0_i32, %c0_i32_0 : i32, i32
  }
  func.func @transform_3(%arg0: i32, %arg1: i32) -> (i32, i32, i32) {
    %c0_i32 = arith.constant 0 : i32
    %c0_i32_0 = arith.constant 0 : i32
    %c0_i32_1 = arith.constant 0 : i32
    return %arg0, %c0_i32, %c0_i32_0 : i32, i32, i32
  }
}

</mosaic_0001>

<llo_original>
// kernel: tpu_custom_call.1
$region0: #{tpu_custom_call.1}
  #allocation0 [shape = 'u32[]', space=smem, size = 0x4, offset = 0x4, fixed_abs, tag = 'smem constant byte address 0x4 - core index']
  #allocation1 [shape = 'u32[72,128]{1,0:T(1,128)}', space=vmem, size = 0x9000, scoped, tag = 'internal scratch']
  #allocation2 [shape = 'f32[2,1]{1,0:T(2,128)}', space=vmem, size = 0x400, scoped, tag = 'scratch operand']
  #allocation3 [shape = 'f32[2,1]{1,0:T(2,128)}', space=vmem, size = 0x400, scoped, tag = 'scratch operand']
  #allocation4 [shape = 'f32[2,4]{1,0:T(2,128)}', space=vmem, size = 0x400, scoped, tag = 'scratch operand']
  %s0 = inlined_call_operand.vmem [shape: f32[2,4,256], index: 0, kind: input, shape index: {}]
  %s1 = inlined_call_operand.vmem [shape: f32[8,4], index: 1, kind: input, shape index: {}]
  %s2 = inlined_call_operand.vmem [shape: f32[8,1], index: 2, kind: input, shape index: {}]
  %s3 = inlined_call_operand.vmem [shape: f32[2,8,2], index: 3, kind: output, shape index: {}]
  %s4 = sld [smem:[#allocation0]]
  $region53: #{tpu_custom_call.1} parent=0
    _
  %s6 = ssub.s32 1, %s4
  %s7 = scalar_select 0, %s6, %s4
  loop: start=0, step=1, limit=6
  $region2: #{tpu_custom_call.1} parent=0 // loop_pre_header
    _
  $region3: #{tpu_custom_call.1} parent=0 // loop_header
    %s9 = sphi 0, %s13
    %p10 = scmp.ge.s32.totalorder %s9, 6
    %s16 = sphi 0, %s28
    %s17 = sphi 0, %s24
    %s18 = sphi 0, %s16
    %s19 = sphi 0, %s17
    %s20 = sphi 0, %s18
    %s21 = sphi 0, %s19
    %s33 = sphi 0, %s35
    %s36 = sphi 0, %s33
    %s37 = sphi 0, %s36
    %s53 = sphi 0, %s37
    %s57 = sphi 0, %s57
    %s59 = sphi 0, %s57
    %s60 = sphi 0, %s59
    %s74 = sphi 0, %s60
    %s78 = sphi 0, %s78
    %s80 = sphi 0, %s78
    %s81 = sphi 0, %s80
    %s95 = sphi 0, %s81
    %s101 = sphi 0, %s103
    %s104 = sphi 0, %s101
    %s105 = sphi 0, %s104
    %s121 = sphi 0, %s105
  $region4: #{tpu_custom_call.1} parent=0 // loop_header_branch
    %12 = sbr.rel (%p10) target = $region8
  $region5: #{tpu_custom_call.1} parent=0 // loop_body
    %s14 = ssub.s32 %s9, 1
    %s15 = ssub.s32 %s9, 2
    %s22 = sadd.s32 1, %s17
    %p23 = scmp.ge.s32.totalorder %s22, 2
    %s24 = scalar_select %p23, 0, %s22
    %s25 = sadd.s32 1, %s16
    %s26 = scalar_select %p23, %s25, %s16
    %p27 = scmp.ge.s32.totalorder %s26, 2
    %s28 = scalar_select %p27, 0, %s26
    %s29 = ssub.s32 %s16, %s28
    %s30 = ssub.s32 %s17, %s24
    %s31 = sor.u32 %s29, %s30
    %p32 = scmp.eq.s32.totalorder %s31, 0
    %s34 = sadd.s32 %s33, 1
    %s35 = scalar_select %p32, %s33, %s34
    %p38 = pneg %p32
    %p39 = scmp.eq.s32.totalorder %s9, 3
    %p40 = por %p38, %p39
    %p41 = scmp.ne.s32.totalorder %s33, %s36
    %p42 = scmp.eq.s32.totalorder %s9, 0
    %p43 = por %p41, %p42
    %p44 = scmp.ne.s32.totalorder %s33, %s36
    %p45 = scmp.eq.s32.totalorder %s14, 3
    %p46 = por %p44, %p45
    %p47 = scmp.ne.s32.totalorder %s36, %s37
    %p48 = scmp.eq.s32.totalorder %s14, 0
    %p49 = por %p47, %p48
    %p50 = scmp.ne.s32.totalorder %s36, %s37
    %p51 = scmp.eq.s32.totalorder %s15, 3
    %p52 = por %p50, %p51
    %p54 = scmp.ne.s32.totalorder %s37, %s53
    %p55 = scmp.eq.s32.totalorder %s15, 0
    %p56 = por %p54, %p55
    %s58 = sadd.s32 %s57, 1
    %p61 = scmp.eq.s32.totalorder %s9, 3
    %p62 = scmp.ne.s32.totalorder %s57, %s59
    %p63 = scmp.eq.s32.totalorder %s9, 0
    %p64 = por %p62, %p63
    %p65 = scmp.ne.s32.totalorder %s57, %s59
    %p66 = scmp.eq.s32.totalorder %s14, 3
    %p67 = por %p65, %p66
    %p68 = scmp.ne.s32.totalorder %s59, %s60
    %p69 = scmp.eq.s32.totalorder %s14, 0
    %p70 = por %p68, %p69
    %p71 = scmp.ne.s32.totalorder %s59, %s60
    %p72 = scmp.eq.s32.totalorder %s15, 3
    %p73 = por %p71, %p72
    %p75 = scmp.ne.s32.totalorder %s60, %s74
    %p76 = scmp.eq.s32.totalorder %s15, 0
    %p77 = por %p75, %p76
    %s79 = sadd.s32 %s78, 1
    %p82 = scmp.eq.s32.totalorder %s9, 3
    %p83 = scmp.ne.s32.totalorder %s78, %s80
    %p84 = scmp.eq.s32.totalorder %s9, 0
    %p85 = por %p83, %p84
    %p86 = scmp.ne.s32.totalorder %s78, %s80
    %p87 = scmp.eq.s32.totalorder %s14, 3
    %p88 = por %p86, %p87
    %p89 = scmp.ne.s32.totalorder %s80, %s81
    %p90 = scmp.eq.s32.totalorder %s14, 0
    %p91 = por %p89, %p90
    %p92 = scmp.ne.s32.totalorder %s80, %s81
    %p93 = scmp.eq.s32.totalorder %s15, 3
    %p94 = por %p92, %p93
    %p96 = scmp.ne.s32.totalorder %s81, %s95
    %p97 = scmp.eq.s32.totalorder %s15, 0
    %p98 = por %p96, %p97
    %s99 = ssub.s32 %s16, %s28
    %p100 = scmp.eq.s32.totalorder %s99, 0
    %s102 = sadd.s32 %s101, 1
    %s103 = scalar_select %p100, %s101, %s102
    %p106 = pneg %p100
    %p107 = scmp.eq.s32.totalorder %s9, 3
    %p108 = por %p106, %p107
    %p109 = scmp.ne.s32.totalorder %s101, %s104
    %p110 = scmp.eq.s32.totalorder %s9, 0
    %p111 = por %p109, %p110
    %p112 = scmp.ne.s32.totalorder %s101, %s104
    %p113 = scmp.eq.s32.totalorder %s14, 3
    %p114 = por %p112, %p113
    %p115 = scmp.ne.s32.totalorder %s104, %s105
    %p116 = scmp.eq.s32.totalorder %s14, 0
    %p117 = por %p115, %p116
    %p118 = scmp.ne.s32.totalorder %s104, %s105
    %p119 = scmp.eq.s32.totalorder %s15, 3
    %p120 = por %p118, %p119
    %p122 = scmp.ne.s32.totalorder %s105, %s121
    %p123 = scmp.eq.s32.totalorder %s15, 0
    %p124 = por %p122, %p123
    %p125 = scmp.le.s32.totalorder 1, %s9
    %p126 = scmp.lt.s32.totalorder %s9, 5
    %p127 = pnand %p125, %p126
    %p128 = pneg %p127
    // Predicated region
    $region9: #{tpu_custom_call.1} parent=5 // pred_check
      _
    $region10: #{tpu_custom_call.1} parent=5 // pred_check_branch
      %130 = sbr.rel (%p127) target = $region12
    $region11: #{tpu_custom_call.1} parent=5 // pred_region
      %s131 = ssub.s32 %s9, 1
      // Predicated region
      $region13: #{tpu_custom_call.1} parent=11 // pred_check
        %p132 = pneg %p70
      $region14: #{tpu_custom_call.1} parent=11 // pred_check_branch
        %134 = sbr.rel (%p132) target = $region16
      $region15: #{tpu_custom_call.1} parent=11 // pred_region
        _
      $region16: #{tpu_custom_call.1} parent=11 // pred_fallthru
        _
      // Predicated region
      $region17: #{tpu_custom_call.1} parent=11 // pred_check
        %p135 = pneg %p91
      $region18: #{tpu_custom_call.1} parent=11 // pred_check_branch
        %137 = sbr.rel (%p135) target = $region20
      $region19: #{tpu_custom_call.1} parent=11 // pred_region
        _
      $region20: #{tpu_custom_call.1} parent=11 // pred_fallthru
        _
    $region12: #{tpu_custom_call.1} parent=5 // pred_fallthru
      _
    %p138 = scmp.lt.s32.totalorder %s9, 4
    // Predicated region
    $region21: #{tpu_custom_call.1} parent=5 // pred_check
      %p139 = pneg %p138
    $region22: #{tpu_custom_call.1} parent=5 // pred_check_branch
      %141 = sbr.rel (%p139) target = $region24
    $region23: #{tpu_custom_call.1} parent=5 // pred_region
      // Predicated region
      $region25: #{tpu_custom_call.1} parent=23 // pred_check
        %p142 = pneg %p43
      $region26: #{tpu_custom_call.1} parent=23 // pred_check_branch
        %144 = sbr.rel (%p142) target = $region28
      $region27: #{tpu_custom_call.1} parent=23 // pred_region
        %p145 = scmp.lt.s32.totalorder %s16, 1
        %s146 = scalar_select %p145, %s16, 1
        %p147 = scmp.lt.s32.totalorder %s17, 1
        %s148 = scalar_select %p147, %s17, 1
        %s149 = smul.addr %s146, 2
        %s150 = sadd.s32 %s148, %s149
        %s151 = smul.addr %s150, 4
        %s152 = scalar_lea.vmem %s0, %s151
      $region28: #{tpu_custom_call.1} parent=23 // pred_fallthru
        _
    $region24: #{tpu_custom_call.1} parent=5 // pred_fallthru
      _
    %p153 = scmp.le.s32.totalorder 1, %s9
    %p154 = scmp.lt.s32.totalorder %s9, 5
    %p155 = pnand %p153, %p154
    %p156 = pneg %p155
    // Predicated region
    $region29: #{tpu_custom_call.1} parent=5 // pred_check
      _
    $region30: #{tpu_custom_call.1} parent=5 // pred_check_branch
      %158 = sbr.rel (%p155) target = $region32
    $region31: #{tpu_custom_call.1} parent=5 // pred_region
      %s159 = ssub.s32 %s9, 1
      %p160 = scmp.lt.s32.totalorder %s18, 1
      %s161 = scalar_select %p160, %s18, 1
      %p162 = scmp.lt.s32.totalorder %s19, 1
      %s163 = scalar_select %p162, %s19, 1
      %s164 = smul.addr %s161, 2
      %s165 = sadd.s32 %s163, %s164
      %s166 = smul.addr %s165, 4
      %s167 = scalar_lea.vmem %s0, %s166
      %p168 = pneg %p49
      %p169 = pneg %p46
      %p170 = pneg %p70
      %p171 = pneg %p67
      %p172 = pneg %p91
      %p173 = pneg %p88
      %p174 = pneg %p117
      %p175 = pneg %p114
      %p176 = scmp.lt.s32.totalorder %s18, 1
      %s177 = scalar_select %p176, %s18, 1
      %s178 = smul.addr %s177, 8
      %s179 = scalar_lea.vmem %s3, %s178
      %p180 = scmp.lt.s32.totalorder %s18, 1
      %s181 = scalar_select %p180, %s18, 1
      %p182 = scmp.lt.s32.totalorder %s19, 1
      %s183 = scalar_select %p182, %s19, 1
      %s184 = smul.addr %s181, 2
      %s185 = sadd.s32 %s183, %s184
      %s186 = smul.addr %s185, 4
      %s187 = scalar_lea.vmem %s0, %s186
      %p188 = scmp.lt.s32.totalorder %s18, 1
      %s189 = scalar_select %p188, %s18, 1
      %s190 = smul.addr %s189, 8
      %s191 = scalar_lea.vmem %s3, %s190
      %p192 = scmp.eq.s32.totalorder %s19, 0
      // Predicated region
      $region33: #{tpu_custom_call.1} parent=31 // pred_check
        %p193 = pneg %p192
      $region34: #{tpu_custom_call.1} parent=31 // pred_check_branch
        %195 = sbr.rel (%p193) target = $region36
      $region35: #{tpu_custom_call.1} parent=31 // pred_region
        %vm196 = vcmask 1024
        %197 = vst.msk [vmem:[#allocation2] sm:$0x3] %vm196, -inf
        %198 = vst.msk [vmem:[#allocation3] sm:$0x3] %vm196, 0.0
        %vm199 = vcmask 25600
        %200 = vst.msk [vmem:[#allocation4] sm:$0x3] %vm199, 0.0
      $region36: #{tpu_custom_call.1} parent=31 // pred_fallthru
        _
      %v201 = vld [vmem:[%s187] sm:$0xf]
      %v202 = vlaneseq
      %v203 = vshrl.u32 %v202, 7
      %vm204 = vcmask 1043456
      %v205 = vsel %vm204, %v201, -inf
      %v206 = vrot.slane %v205, 4
      %v207 = vmax.f32 %v205, %v206
      %v208 = vrot.slane %v207, 2
      %v209 = vmax.f32 %v207, %v208
      %v210 = vrot.slane %v209, 1
      %v211 = vmax.f32 %v209, %v210
      %vm212 = vcmp.eq.f32.partialorder %v201, %v211
      %v213 = vsel %vm212, %v203, 4
      %v214 = vsel %vm204, %v213, 2147483647
      %v215 = vrot.slane %v214, 4
      %vm216 = vcmp.lt.s32.totalorder %v214, %v215
      %v217 = vsel %vm216, %v214, %v215
      %v218 = vrot.slane %v217, 2
      %vm219 = vcmp.lt.s32.totalorder %v217, %v218
      %v220 = vsel %vm219, %v217, %v218
      %v221 = vrot.slane %v220, 1
      %vm222 = vcmp.lt.s32.totalorder %v220, %v221
      %v223 = vsel %vm222, %v220, %v221
      %vm224 = vcmp.eq.s32.totalorder %v203, %v223
      %v225 = vsel %vm224, -inf, %v201
      %v226 = vsel %vm204, %v225, -inf
      %v227 = vrot.slane %v226, 4
      %v228 = vmax.f32 %v226, %v227
      %v229 = vrot.slane %v228, 2
      %v230 = vmax.f32 %v228, %v229
      %v231 = vrot.slane %v230, 1
      %v232 = vmax.f32 %v230, %v231
      %vm233 = vcmask 1040384
      %v234 = vsel %vm233, %v211, %v232
      %v235 = vld [vmem:[#allocation2] sm:$0x3]
      %vm236 = vcmask 1041408
      %v237 = vsel %vm236, %v234, -inf
      %238 = vmax.xlane.f32.xlu0 %v237
      %v239 = vpop.xlane.xlu0 %238
      %v240 = vmax.f32 %v235, %v239
      %v241 = vsub.f32 %v235, %v240
      %v242 = vmul.f32 %v241, 1.442695
      %v243 = vpow.pop %v242
      %245 = vset.pattern.permute.xlu0 0
      %246 = vperm.xlu0 %245, %v240
      %v247 = vpop.permute.xlu0 %246
      %v249 = vsub.f32 %v234, %v247
      %v250 = vmul.f32 %v249, 1.442695
      %v251 = vpow.pop %v250
      %v252 = vld [vmem:[#allocation3] sm:$0x3]
      %v253 = vmul.f32 %v243, %v252
      %v254 = vsel %vm236, %v251, 0.0
      %255 = vadd.xlane.f32.xlu0 %v254
      %v256 = vpop.xlane.xlu0 %255
      %v257 = vadd.f32 %v253, %v256
      %vm258 = vcmask 1024
      %259 = vst.msk [vmem:[#allocation3] sm:$0x3] %vm258, %v257
      %260 = vst.msk [vmem:[#allocation2] sm:$0x3] %vm258, %v240
      %261 = vmatpush.xpose.msra.mxu0 0.0
      %262 = vmatpush.xpose.msra.mxu0 0.0
      %263 = vmatpush.xpose.msra.mxu0 0.0
      %264 = vmatpush.xpose.msra.mxu0 0.0
      %265 = vmatpush.xpose.msra.mxu0 0.0
      %266 = vmatpush.xpose.msra.mxu0 0.0
      %267 = vmatpush.xpose.msra.mxu0 0.0
      %268 = vmatpush.xpose.msra.mxu0 0.0
      %269 = vmatpush.xpose.msra.mxu0 0.0
      %270 = vmatpush.xpose.msra.mxu0 0.0
      %271 = vmatpush.xpose.msra.mxu0 0.0
      %272 = vmatpush.xpose.msra.mxu0 0.0
      %273 = vmatpush.xpose.msra.mxu0 0.0
      %274 = vmatpush.xpose.msra.mxu0 0.0
      %275 = vmatpush.xpose.msra.mxu0 0.0
      %276 = vmatpush.xpose.msra.mxu0 %v201
      %277 = vmatmul.f32.gmra.mxu0 %v251
      %v278 = vpop.f32.mrf.mxu0
      %v279 = vadd.f32 0.0, %v278
      %280 = vdwg.mxu0
      %v281 = vld [vmem:[#allocation4] sm:$0x3]
      %283 = vset.pattern.permute.xlu0 0
      %284 = vperm.xlu0 %283, %v243
      %v285 = vpop.permute.xlu0 %284
      %v287 = vmul.f32 %v281, %v285
      %v288 = vadd.f32 %v287, %v279
      %vm289 = vcmask 25600
      %290 = vst.msk [vmem:[#allocation4] sm:$0x3] %vm289, %v288
      %p291 = scmp.eq.s32.totalorder %s19, 1
      // Predicated region
      $region37: #{tpu_custom_call.1} parent=31 // pred_check
        %p292 = pneg %p291
      $region38: #{tpu_custom_call.1} parent=31 // pred_check_branch
        %294 = sbr.rel (%p292) target = $region40
      $region39: #{tpu_custom_call.1} parent=31 // pred_region
        %v295 = vld [vmem:[#allocation3] sm:$0x3]
        %v296 = vrcp.pop %v295
        %v297 = vld [vmem:[#allocation4] sm:$0x3]
        %299 = vset.pattern.permute.xlu0 0
        %300 = vperm.xlu0 %299, %v296
        %v301 = vpop.permute.xlu0 %300
        %v303 = vmul.f32 %v297, %v301
        %v304 = vld [vmem:[%s1] sm:$0xff]
        %v305 = vld [vmem:[%s2] sm:$0xff]
        %307 = vset.pattern.permute.xlu0 0
        %308 = vperm.xlu0 %307, %v305
        %v309 = vpop.permute.xlu0 %308
        %vm311 = vcmask 31744
        %v313 = vsel %vm311, %v304, 0
        %v316 = vsel %vm311, %v303, 0
        %318 = vmatpush.xpose.msra.mxu0 0.0
        %319 = vmatpush.xpose.msra.mxu0 0.0
        %320 = vmatpush.xpose.msra.mxu0 0.0
        %321 = vmatpush.xpose.msra.mxu0 0.0
        %322 = vmatpush.xpose.msra.mxu0 0.0
        %323 = vmatpush.xpose.msra.mxu0 0.0
        %324 = vmatpush.xpose.msra.mxu0 0.0
        %325 = vmatpush.xpose.msra.mxu0 0.0
        %326 = vmatpush.xpose.msra.mxu0 0.0
        %327 = vmatpush.xpose.msra.mxu0 0.0
        %328 = vmatpush.xpose.msra.mxu0 0.0
        %329 = vmatpush.xpose.msra.mxu0 0.0
        %330 = vmatpush.xpose.msra.mxu0 0.0
        %331 = vmatpush.xpose.msra.mxu0 0.0
        %332 = vmatpush.xpose.msra.mxu0 0.0
        %333 = vmatpush.xpose.msra.mxu0 %v316
        %334 = vmatmul.f32.gmra.mxu0 %v313
        %v335 = vpop.f32.mrf.mxu0
        %v336 = vadd.f32 %v309, %v335
        %337 = vdwg.mxu0
        %vm338 = vcmask 15360
        %339 = vst.msk [vmem:[%s191] sm:$0xff] %vm338, %v336
      $region40: #{tpu_custom_call.1} parent=31 // pred_fallthru
        _
      %p340 = scmp.lt.s32.totalorder %s18, 1
      %s341 = scalar_select %p340, %s18, 1
      %s342 = smul.addr %s341, 8
      %s343 = scalar_lea.vmem %s3, %s342
      // Predicated region
      $region41: #{tpu_custom_call.1} parent=31 // pred_check
        %p344 = pneg %p114
      $region42: #{tpu_custom_call.1} parent=31 // pred_check_branch
        %346 = sbr.rel (%p344) target = $region44
      $region43: #{tpu_custom_call.1} parent=31 // pred_region
        _
      $region44: #{tpu_custom_call.1} parent=31 // pred_fallthru
        _
    $region32: #{tpu_custom_call.1} parent=5 // pred_fallthru
      _
    %p347 = scmp.le.s32.totalorder 2, %s9
    // Predicated region
    $region45: #{tpu_custom_call.1} parent=5 // pred_check
      %p348 = pneg %p347
    $region46: #{tpu_custom_call.1} parent=5 // pred_check_branch
      %350 = sbr.rel (%p348) target = $region48
    $region47: #{tpu_custom_call.1} parent=5 // pred_region
      %s351 = ssub.s32 %s9, 2
      // Predicated region
      $region49: #{tpu_custom_call.1} parent=47 // pred_check
        %p352 = pneg %p120
      $region50: #{tpu_custom_call.1} parent=47 // pred_check_branch
        %354 = sbr.rel (%p352) target = $region52
      $region51: #{tpu_custom_call.1} parent=47 // pred_region
        %p355 = scmp.lt.s32.totalorder %s20, 1
        %s356 = scalar_select %p355, %s20, 1
        %s357 = smul.addr %s356, 8
        %s358 = scalar_lea.vmem %s3, %s357
      $region52: #{tpu_custom_call.1} parent=47 // pred_fallthru
        _
    $region48: #{tpu_custom_call.1} parent=5 // pred_fallthru
      _
  $region6: #{tpu_custom_call.1} parent=0 // loop_footer
    %s13 = sadd.s32 1, %s9
  $region7: #{tpu_custom_call.1} parent=0 // loop_footer_branch
    %8 = sbr.rel target = $region3
  $region8: #{tpu_custom_call.1} parent=0 // loop_exit
    _

</llo_original>
